<compile_context>
chip_gen: v7x
topology: tpu7x:2x2x1
jax: 0.10.0
libtpu: 0.0.40
codegen_flags: <defaults>
</compile_context>

<pallas_src>
import functools
import math

import jax
import jax.numpy as jnp
from jax.experimental import pallas as pl
from jax.experimental.pallas import tpu as pltpu


# ---------------------------------------------------------------------------
# Generation-aware VMEM budget (v5e/v6e: 128 MiB, v7x: 64 MiB per TensorCore)
# ---------------------------------------------------------------------------
def _vmem_limit_bytes():
    try:
        return int(pltpu.get_tpu_info().vmem_capacity_bytes * 0.8)
    except Exception:     # interpret mode / unknown chip -> compiler default
        return None


def _compiler_params(dim_sem):
    return pltpu.CompilerParams(dimension_semantics=dim_sem,
                                vmem_limit_bytes=_vmem_limit_bytes())


# ---------------------------------------------------------------------------
# Kernel: row-tiled dense layer  y = x @ W + b   (used for QKV and out proj)
# ---------------------------------------------------------------------------
def _linear_kernel(x_ref, w_ref, b_ref, o_ref):
    acc = jnp.dot(x_ref[...], w_ref[...], preferred_element_type=jnp.float32)
    o_ref[...] = (acc + b_ref[...].astype(jnp.float32)).astype(o_ref.dtype)


def _linear(x2d, w, b):
    R, K = x2d.shape
    N = w.shape[1]
    TR = next((t for t in (512, 256, 128) if R % t == 0), R)
    return pl.pallas_call(
        _linear_kernel,
        out_shape=jax.ShapeDtypeStruct((R, N), x2d.dtype),
        grid_spec=pltpu.PrefetchScalarGridSpec(
            num_scalar_prefetch=0,
            grid=(R // TR,),
            in_specs=[
                pl.BlockSpec((TR, K), lambda r: (r, 0)),
                pl.BlockSpec((K, N), lambda r: (0, 0)),   # weight resident (const idx)
                pl.BlockSpec((1, N), lambda r: (0, 0)),
            ],
            out_specs=pl.BlockSpec((TR, N), lambda r: (r, 0)),
        ),
        compiler_params=_compiler_params(("parallel",)),
    )(x2d, w, b.reshape(1, N))


# ---------------------------------------------------------------------------
# Kernel: flash attention over (batch, query-tile, kv-tile) with online softmax
# ---------------------------------------------------------------------------
def _flash_kernel(*refs, has_mask, approx_recip):
    if has_mask:
        q_ref, k_ref, v_ref, mask_ref, o_ref, m_sc, l_sc, acc_sc = refs
    else:
        q_ref, k_ref, v_ref, o_ref, m_sc, l_sc, acc_sc = refs
        mask_ref = None

    kt = pl.program_id(2)

    @pl.when(kt == 0)
    def _():
        m_sc[...] = jnp.full(m_sc.shape, -1e30, dtype=m_sc.dtype)
        l_sc[...] = jnp.zeros(l_sc.shape, dtype=l_sc.dtype)
        acc_sc[...] = jnp.zeros(acc_sc.shape, dtype=acc_sc.dtype)

    q = q_ref[0]                                   # [H, TQ, d]  (scale pre-folded)
    k = k_ref[0]                                   # [H, TK, d]
    v = v_ref[0]                                   # [H, TK, d]

    s = jnp.einsum('hqd,hkd->hqk', q, k,
                   preferred_element_type=jnp.float32)        # [H, TQ, TK] f32
    if has_mask:
        s = s + mask_ref[...].astype(jnp.float32)[None]

    m_prev = m_sc[...]
    m_new = jnp.maximum(m_prev, s.max(axis=-1, keepdims=True))
    alpha = jnp.exp(m_prev - m_new)
    p = jnp.exp(s - m_new)
    l_sc[...] = alpha * l_sc[...] + p.sum(axis=-1, keepdims=True)
    acc_sc[...] = alpha * acc_sc[...] + jnp.einsum(
        'hqk,hkd->hqd', p.astype(v.dtype), v,
        preferred_element_type=jnp.float32)
    m_sc[...] = m_new

    @pl.when(kt == pl.num_programs(2) - 1)
    def _():
        if approx_recip:   # bf16 output: approx reciprocal on the EUP slot
            out = acc_sc[...] * pl.reciprocal(l_sc[...], approx=True)
        else:              # f32 output: exact division for parity
            out = acc_sc[...] / l_sc[...]
        o_ref[0] = out.astype(o_ref.dtype)


def _flash_attention(q, k, v, mask, *, q_tile, kv_tile):
    B, H, Sp, d = q.shape
    TQ = min(q_tile, Sp)
    TK = min(kv_tile, Sp)
    assert Sp % TQ == 0 and Sp % TK == 0
    has_mask = mask is not None

    kernel = functools.partial(_flash_kernel, has_mask=has_mask,
                               approx_recip=(q.dtype != jnp.float32))

    q_spec = pl.BlockSpec((1, H, TQ, d), lambda b, qt, kt: (b, 0, qt, 0))
    kv_spec = pl.BlockSpec((1, H, TK, d), lambda b, qt, kt: (b, 0, kt, 0))
    in_specs = [q_spec, kv_spec, kv_spec]
    operands = [q, k, v]
    if has_mask:
        in_specs.append(pl.BlockSpec((TQ, TK), lambda b, qt, kt: (qt, kt)))
        operands.append(mask)

    return pl.pallas_call(
        kernel,
        out_shape=jax.ShapeDtypeStruct((B, H, Sp, d), q.dtype),
        grid_spec=pltpu.PrefetchScalarGridSpec(
            num_scalar_prefetch=0,
            grid=(B, Sp // TQ, Sp // TK),
            in_specs=in_specs,
            out_specs=pl.BlockSpec((1, H, TQ, d),
                                   lambda b, qt, kt: (b, 0, qt, 0)),
            scratch_shapes=[
                pltpu.VMEM((H, TQ, 1), jnp.float32),   # running row max  m
                pltpu.VMEM((H, TQ, 1), jnp.float32),   # running denom    l
                pltpu.VMEM((H, TQ, d), jnp.float32),   # running numerator
            ],
        ),
        compiler_params=_compiler_params(("parallel", "parallel", "arbitrary")),
    )(*operands)


# ---------------------------------------------------------------------------
# Public wrapper: full multi-head self-attention forward
# ---------------------------------------------------------------------------
def self_attention(x, params, *, num_heads, attn_mask=None,
                   q_tile=128, kv_tile=128):
    """x: [B, S, E]; params = (wq, bq, wk, bk, wv, bv, wo, bo) in x @ W form.
    attn_mask: optional [S, S] additive-float or bool mask (PyTorch semantics).
    """
    B, S, E = x.shape
    H = num_heads
    assert E % H == 0, "embed_dim must be divisible by num_heads"
    d = E // H
    dt = x.dtype
    wq, bq, wk, bk, wv, bv, wo, bo = params

    # Fold 1/sqrt(d) into the Q projection and fuse the three in-projections.
    scale = 1.0 / math.sqrt(d)
    w_in = jnp.concatenate([wq * scale, wk, wv], axis=1).astype(dt)   # [E, 3E]
    b_in = jnp.concatenate([bq * scale, bk, bv], axis=0).astype(dt)   # [3E]
    wo = wo.astype(dt)
    bo = bo.astype(dt)

    # Pad S up to a tile multiple (no silent full-S grid collapse).
    mult = q_tile if S >= q_tile else 8
    Sp = ((S + mult - 1) // mult) * mult
    pad = Sp - S
    xp = jnp.pad(x, ((0, 0), (0, pad), (0, 0))) if pad else x

    # Additive mask: bool -> float, pad key columns with -1e30 so padded keys
    # never contribute to softmax of valid query rows.
    # TODO(synk): only 2-D [S,S] attn_mask supported (no per-batch 3-D masks /
    # key_padding_mask variants of nn.MultiheadAttention).
    mask = None
    if attn_mask is not None:
        m = attn_mask
        if m.dtype == jnp.bool_:
            m = jnp.where(m, -1e30, 0.0)
        m = m.astype(jnp.float32)
        if pad:
            m = jnp.pad(m, ((0, pad), (0, pad)), constant_values=-1e30)
        mask = m
    elif pad:
        cols = jax.lax.broadcasted_iota(jnp.int32, (Sp, Sp), 1)
        mask = jnp.where(cols >= S, -1e30, 0.0).astype(jnp.float32)
    if mask is not None and dt == jnp.bfloat16:
        mask = mask.astype(jnp.bfloat16)   # halve mask stream bandwidth

    # ---- stage 1: fused QKV in-projection ([B*Sp, E] @ [E, 3E]) ------------
    R = B * Sp
    qkv = _linear(xp.reshape(R, E), w_in, b_in)            # [R, 3E]

    # Layout plumbing (XLA, one pass): split heads -> [B, H, Sp, d]
    qkv = qkv.reshape(B, Sp, 3, H, d)
    q = qkv[:, :, 0].transpose(0, 2, 1, 3)
    k = qkv[:, :, 1].transpose(0, 2, 1, 3)
    v = qkv[:, :, 2].transpose(0, 2, 1, 3)

    # ---- stage 2: flash attention (online softmax over kv tiles) -----------
    ctx = _flash_attention(q, k, v, mask, q_tile=q_tile, kv_tile=kv_tile)

    # Layout plumbing (XLA): merge heads back -> [R, E]
    ctx2 = ctx.transpose(0, 2, 1, 3).reshape(R, E)

    # ---- stage 3: output projection ([R, E] @ [E, E]) -----------------------
    y = _linear(ctx2, wo, bo).reshape(B, Sp, E)
    return y[:, :S, :] if pad else y


# ---------------------------------------------------------------------------
# Pure-JAX reference (canonical MultiheadAttention math) for correctness check
# ---------------------------------------------------------------------------
def _ref_self_attention(x, params, num_heads, attn_mask=None):
    wq, bq, wk, bk, wv, bv, wo, bo = params
    B, S, E = x.shape
    d = E // num_heads
    q = x @ wq + bq
    k = x @ wk + bk
    v = x @ wv + bv
    q = q.reshape(B, S, num_heads, d).transpose(0, 2, 1, 3)
    k = k.reshape(B, S, num_heads, d).transpose(0, 2, 1, 3)
    v = v.reshape(B, S, num_heads, d).transpose(0, 2, 1, 3)
    s = jnp.einsum('bhqd,bhkd->bhqk', q, k) / math.sqrt(d)
    if attn_mask is not None:
        s = s + attn_mask[None, None]
    p = jax.nn.softmax(s, axis=-1)
    o = jnp.einsum('bhqk,bhkd->bhqd', p, v).transpose(0, 2, 1, 3).reshape(B, S, E)
    return o @ wo + bo


# ---------------------------------------------------------------------------
if __name__ == "__main__":
    B, S, E, H = 2, 8, 32, 4
    key = jax.random.PRNGKey(0)
    ks = jax.random.split(key, 10)

    def w(k_, shape, scale=0.05):
        return jax.random.normal(k_, shape, jnp.float32) * scale

    params = (
        w(ks[0], (E, E)), w(ks[1], (E,), 0.02),   # Wq, bq
        w(ks[2], (E, E)), w(ks[3], (E,), 0.02),   # Wk, bk
        w(ks[4], (E, E)), w(ks[5], (E,), 0.02),   # Wv, bv
        w(ks[6], (E, E)), w(ks[7], (E,), 0.02),   # Wo, bo
    )
    x = jax.random.normal(ks[8], (B, S, E), jnp.float32)

    # 1) default forward (attn_mask=None), matching forward(embed_states)
    out = jax.block_until_ready(self_attention(x, params, num_heads=H))
    ref = _ref_self_attention(x, params, H)
    assert out.shape == (B, S, E)
    assert jnp.allclose(out, ref, atol=2e-3, rtol=2e-3), "no-mask mismatch"

    # 2) with an additive float attn_mask (causal), PyTorch float-mask semantics
    causal = jnp.where(jnp.triu(jnp.ones((S, S), jnp.float32), 1) > 0,
                       -1e9, 0.0).astype(jnp.float32)
    out_m = jax.block_until_ready(
        self_attention(x, params, num_heads=H, attn_mask=causal))
    ref_m = _ref_self_attention(x, params, H, attn_mask=causal)
    assert jnp.allclose(out_m, ref_m, atol=2e-3, rtol=2e-3), "masked mismatch"

    print("KERNEL_OK")
</pallas_src>

<mosaic_0001>
module attributes {stable_mosaic.version = 11 : i64} {
  func.func @_linear_kernel(%arg0: i32, %arg1: memref<16x32xf32, #tpu.memory_space<vmem>>, %arg2: memref<32x96xf32, #tpu.memory_space<vmem>>, %arg3: memref<1x96xf32, #tpu.memory_space<vmem>>, %arg4: memref<16x96xf32, #tpu.memory_space<vmem>>) attributes {dimension_semantics = [#tpu.dimension_semantics<parallel>], iteration_bounds = array<i64: 1>, scalar_prefetch = 0 : i64, scratch_operands = 0 : i64, tpu.core_type = #tpu.core_type<tc>, window_params = [{transform_indices = @transform_0, window_bounds = array<i64: 16, 32>}, {pipeline_mode = #tpu.pipeline_mode<synchronous>, transform_indices = @transform_1, window_bounds = array<i64: 32, 96>}, {pipeline_mode = #tpu.pipeline_mode<synchronous>, transform_indices = @transform_2, window_bounds = array<i64: 1, 96>}, {transform_indices = @transform_3, window_bounds = array<i64: 16, 96>}]} {
    %c0 = arith.constant 0 : index
    %c0_0 = arith.constant 0 : index
    %0 = vector.load %arg1[%c0, %c0_0] : memref<16x32xf32, #tpu.memory_space<vmem>>, vector<16x32xf32>
    %c0_1 = arith.constant 0 : index
    %c0_2 = arith.constant 0 : index
    %1 = vector.load %arg2[%c0_1, %c0_2] : memref<32x96xf32, #tpu.memory_space<vmem>>, vector<32x96xf32>
    %cst = arith.constant dense<0.000000e+00> : vector<16x96xf32>
    %2 = tpu.matmul %0, %1, %cst {dimension_numbers = #tpu.dot_dimension_numbers<[1], [0], [0], [1], [0, 0, 1, 1], [], []>} : vector<16x32xf32>, vector<32x96xf32>, vector<16x96xf32> -> vector<16x96xf32>
    %c0_3 = arith.constant 0 : index
    %c0_4 = arith.constant 0 : index
    %3 = vector.load %arg3[%c0_3, %c0_4] : memref<1x96xf32, #tpu.memory_space<vmem>>, vector<1x96xf32>
    %4 = vector.broadcast %3 : vector<1x96xf32> to vector<16x96xf32>
    %5 = arith.addf %2, %4 : vector<16x96xf32>
    %c0_5 = arith.constant 0 : index
    %c0_6 = arith.constant 0 : index
    %6 = vector.load %arg4[%c0_5, %c0_6] : memref<16x96xf32, #tpu.memory_space<vmem>>, vector<16x96xf32>
    tpu.vector_store %arg4[%c0_5, %c0_6], %5 {strides = array<i32>} : memref<16x96xf32, #tpu.memory_space<vmem>>, vector<16x96xf32>,
    return
  }
  func.func @transform_0(%arg0: i32) -> (i32, i32) {
    %c0_i32 = arith.constant 0 : i32
    %c0_i32_0 = arith.constant 0 : i32
    return %arg0, %c0_i32 : i32, i32
  }
  func.func @transform_1(%arg0: i32) -> (i32, i32) {
    %c0_i32 = arith.constant 0 : i32
    %c0_i32_0 = arith.constant 0 : i32
    %c0_i32_1 = arith.constant 0 : i32
    return %c0_i32, %c0_i32_0 : i32, i32
  }
  func.func @transform_2(%arg0: i32) -> (i32, i32) {
    %c0_i32 = arith.constant 0 : i32
    %c0_i32_0 = arith.constant 0 : i32
    %c0_i32_1 = arith.constant 0 : i32
    return %c0_i32, %c0_i32_0 : i32, i32
  }
  func.func @transform_3(%arg0: i32) -> (i32, i32) {
    %c0_i32 = arith.constant 0 : i32
    %c0_i32_0 = arith.constant 0 : i32
    return %arg0, %c0_i32 : i32, i32
  }
}

</mosaic_0001>

<llo_original>
// kernel: tpu_custom_call.1
$region0: #{tpu_custom_call.1}
  #allocation0 [shape = 'u32[]', space=smem, size = 0x4, offset = 0x4, fixed_abs, tag = 'smem constant byte address 0x4 - core index']
  #allocation1 [shape = 'u32[144,128]{1,0:T(1,128)}', space=vmem, size = 0x12000, scoped, tag = 'internal scratch']
  %s0 = inlined_call_operand.hbm [shape: f32[16,32], index: 0, kind: input, shape index: {}]
  %s1 = inlined_call_operand.hbm [shape: f32[32,96], index: 1, kind: input, shape index: {}]
  %s2 = inlined_call_operand.vmem [shape: f32[1,96], index: 2, kind: input, shape index: {}]
  %s3 = inlined_call_operand.hbm [shape: f32[16,96], index: 3, kind: output, shape index: {}]
  %s4 = sld [smem:[#allocation0]]
  $region30: #{tpu_custom_call.1} parent=0
    _
  %s6 = ssub.s32 1, %s4
  %s7 = scalar_select 0, %s6, %s4
  $region1: #{tpu_custom_call.1} parent=0
    #allocation2 [shape = 'u8[8192]{0}', space=vmem, size = 0x2000, scoped, tag = 'input window, operand 0, single buffered']
    #allocation3 [shape = 's32[1]{0}', space=sflag, size = 0x4, scoped, tag = 'scoped memory for tpu_custom_call.1']
    #allocation4 [shape = 's32[1]{0}', space=sflag, size = 0x4, scoped, tag = 'scoped memory for tpu_custom_call.1']
    #allocation5 [shape = 'u8[16384]{0}', space=vmem, size = 0x4000, scoped, tag = 'input window, operand 1, single buffered']
    #allocation6 [shape = 's32[1]{0}', space=sflag, size = 0x4, scoped, tag = 'scoped memory for tpu_custom_call.1']
    #allocation7 [shape = 'u8[8192]{0}', space=vmem, size = 0x2000, scoped, tag = 'output window, operand 0, single buffered']
    %8 = vsyncpa [#allocation3], 0
    %9 = vsyncpa [#allocation6], 0
    %10 = vsyncpa [#allocation4], 0
    // Predicated region
    $region2: #{tpu_custom_call.1} parent=1 // pred_check
      _
    $region3: #{tpu_custom_call.1} parent=1 // pred_check_branch
      %12 = sbr.rel (0) target = $region5
    $region4: #{tpu_custom_call.1} parent=1 // pred_region
      %s14 = ssub.s32 256, 256
      %15 = vsyncadd [#allocation3], %s14
      %s16 = sshll.u32 [#allocation2], 4
      %s17 = int_to_ptr.vmem [resolvable:$true] %s16
      %22 = dma.hbm_to_vmem [thread:$0]  %s0, 256, %s17, [#allocation3], 128, 128, 8
    $region5: #{tpu_custom_call.1} parent=1 // pred_fallthru
      _
    // Predicated region
    $region6: #{tpu_custom_call.1} parent=1 // pred_check
      _
    $region7: #{tpu_custom_call.1} parent=1 // pred_check_branch
      %24 = sbr.rel (0) target = $region9
    $region8: #{tpu_custom_call.1} parent=1 // pred_region
      %s26 = ssub.s32 512, 512
      %27 = vsyncadd [#allocation6], %s26
      %s28 = sshll.u32 [#allocation5], 4
      %s29 = int_to_ptr.vmem [resolvable:$true] %s28
      %34 = dma.hbm_to_vmem [thread:$0]  %s1, 512, %s29, [#allocation6], 128, 128, 8
    $region9: #{tpu_custom_call.1} parent=1 // pred_fallthru
      _
    // Predicated region
    $region10: #{tpu_custom_call.1} parent=1 // pred_check
      _
    $region11: #{tpu_custom_call.1} parent=1 // pred_check_branch
      %36 = sbr.rel (0) target = $region13
    $region12: #{tpu_custom_call.1} parent=1 // pred_region
      _
    $region13: #{tpu_custom_call.1} parent=1 // pred_fallthru
      _
    // Predicated region
    $region14: #{tpu_custom_call.1} parent=1 // pred_check
      _
    $region15: #{tpu_custom_call.1} parent=1 // pred_check_branch
      %38 = sbr.rel (0) target = $region17
    $region16: #{tpu_custom_call.1} parent=1 // pred_region
      %39 = dma.done [#allocation3], 256
    $region17: #{tpu_custom_call.1} parent=1 // pred_fallthru
      _
    // Predicated region
    $region18: #{tpu_custom_call.1} parent=1 // pred_check
      _
    $region19: #{tpu_custom_call.1} parent=1 // pred_check_branch
      %41 = sbr.rel (0) target = $region21
    $region20: #{tpu_custom_call.1} parent=1 // pred_region
      %42 = dma.done [#allocation6], 512
    $region21: #{tpu_custom_call.1} parent=1 // pred_fallthru
      _
    %v43 = vld [vmem:[#allocation2] sm:$0xff]
    %v44 = vld [vmem:[#allocation2 + $0x8] sm:$0xff]
    %v45 = vld [vmem:[#allocation5] sm:$0xff]
    %v46 = vld [vmem:[#allocation5 + $0x8] sm:$0xff]
    %v47 = vld [vmem:[#allocation5 + $0x10] sm:$0xff]
    %v48 = vld [vmem:[#allocation5 + $0x18] sm:$0xff]
    %v49 = vld [vmem:[%s2] sm:$0x1]
    %v51 = vlaneseq
    %v52 = vshrl.u32 %v51, 7
    %v53 = vsub.s32 0, %v52
    %v54 = vrot.slane %v49, %v53
    %vm56 = vcmask 261120
    %v58 = vsel %vm56, %v43, 0
    %v61 = vsel %vm56, %v44, 0
    %63 = vmatprep.subr.mxu0 0.0
    %64 = vmatpush1.msra.mxu0 %v45
    %65 = vmatprep.subr.mxu0 0.0
    %66 = vmatpush1.msra.mxu0 %v46
    %67 = vmatprep.subr.mxu0 0.0
    %68 = vmatpush1.msra.mxu0 %v47
    %69 = vmatprep.subr.mxu0 0.0
    %70 = vmatpush1.msra.mxu0 %v48
    %71 = vmatprep.subr.mxu0 0.0
    %72 = vmatpush1.msra.mxu0 0.0
    %73 = vmatprep.subr.mxu0 0.0
    %74 = vmatpush1.msra.mxu0 0.0
    %75 = vmatprep.subr.mxu0 0.0
    %76 = vmatpush1.msra.mxu0 0.0
    %77 = vmatprep.subr.mxu0 0.0
    %78 = vmatpush1.msra.mxu0 0.0
    %79 = vmatprep.subr.mxu0 0.0
    %80 = vmatpush1.msra.mxu0 0.0
    %81 = vmatprep.subr.mxu0 0.0
    %82 = vmatpush1.msra.mxu0 0.0
    %83 = vmatprep.subr.mxu0 0.0
    %84 = vmatpush1.msra.mxu0 0.0
    %85 = vmatprep.subr.mxu0 0.0
    %86 = vmatpush1.msra.mxu0 0.0
    %87 = vmatprep.subr.mxu0 0.0
    %88 = vmatpush1.msra.mxu0 0.0
    %89 = vmatprep.subr.mxu0 0.0
    %90 = vmatpush1.msra.mxu0 0.0
    %91 = vmatprep.subr.mxu0 0.0
    %92 = vmatpush1.msra.mxu0 0.0
    %93 = vmatprep.subr.mxu0 0.0
    %94 = vmatpush1.msra.mxu0 0.0
    %95 = vmatprep.subr.mxu0 0.0
    %96 = vmatpush1.msra.mxu0 0.0
    %97 = vmatprep.subr.mxu0 0.0
    %98 = vmatpush1.msra.mxu0 0.0
    %99 = vmatprep.subr.mxu0 0.0
    %100 = vmatpush1.msra.mxu0 0.0
    %101 = vmatprep.subr.mxu0 0.0
    %102 = vmatpush1.msra.mxu0 0.0
    %103 = vmatprep.subr.mxu0 0.0
    %104 = vmatpush1.msra.mxu0 0.0
    %105 = vmatprep.subr.mxu0 0.0
    %106 = vmatpush1.msra.mxu0 0.0
    %107 = vmatprep.subr.mxu0 0.0
    %108 = vmatpush1.msra.mxu0 0.0
    %109 = vmatprep.subr.mxu0 0.0
    %110 = vmatpush1.msra.mxu0 0.0
    %111 = vmatprep.subr.mxu0 0.0
    %112 = vmatpush1.msra.mxu0 0.0
    %113 = vmatprep.subr.mxu0 0.0
    %114 = vmatpush1.msra.mxu0 0.0
    %115 = vmatprep.subr.mxu0 0.0
    %116 = vmatpush1.msra.mxu0 0.0
    %117 = vmatprep.subr.mxu0 0.0
    %118 = vmatpush1.msra.mxu0 0.0
    %119 = vmatprep.subr.mxu0 0.0
    %120 = vmatpush1.msra.mxu0 0.0
    %121 = vmatprep.subr.mxu0 0.0
    %122 = vmatpush1.msra.mxu0 0.0
    %123 = vmatprep.subr.mxu0 0.0
    %124 = vmatpush1.msra.mxu0 0.0
    %125 = vmatprep.subr.mxu0 0.0
    %126 = vmatpush1.msra.mxu0 0.0
    %127 = vmatprep.mubr.f32.mxu0 0.0
    %128 = vmatmul.mubr.f32.gmra.mrb[0].mxu0 %v58
    %v129 = vpop.f32.mrb[0].mxu0
    %v130 = vadd.f32 %v54, %v129
    %v131 = vpop.f32.mrb[0].mxu0
    %132 = vmatprep.mubr.f32.mxu0 0.0
    %133 = vmatmul.mubr.f32.gmra.mrb[0].mxu0 %v61
    %v134 = vpop.f32.mrb[0].mxu0
    %v135 = vadd.f32 %v54, %v134
    %v136 = vpop.f32.mrb[0].mxu0
    %137 = vdwg.mxu0
    %vm138 = vcmask 785408
    %139 = vst.msk [vmem:[#allocation7] sm:$0xff] %vm138, %v130
    %140 = vst.msk [vmem:[#allocation7 + $0x8] sm:$0xff] %vm138, %v135
    // Predicated region
    $region22: #{tpu_custom_call.1} parent=1 // pred_check
      _
    $region23: #{tpu_custom_call.1} parent=1 // pred_check_branch
      %142 = sbr.rel (0) target = $region25
    $region24: #{tpu_custom_call.1} parent=1 // pred_region
      %s144 = ssub.s32 256, 256
      %145 = vsyncadd [#allocation4], %s144
      %s146 = sshll.u32 [#allocation7], 4
      %s147 = int_to_ptr.vmem [resolvable:$true] %s146
      %152 = dma.vmem_to_hbm [thread:$0]  %s147, 256, %s3, [#allocation4], 128, 128, 8
    $region25: #{tpu_custom_call.1} parent=1 // pred_fallthru
      _
    // Predicated region
    $region26: #{tpu_custom_call.1} parent=1 // pred_check
      _
    $region27: #{tpu_custom_call.1} parent=1 // pred_check_branch
      %154 = sbr.rel (0) target = $region29
    $region28: #{tpu_custom_call.1} parent=1 // pred_region
      %155 = dma.done [#allocation4], 256
    $region29: #{tpu_custom_call.1} parent=1 // pred_fallthru
      _
    %156 = vsyncpa [#allocation3], 1
    %157 = vsyncpa [#allocation6], 1
    %158 = vsyncpa [#allocation4], 1

</llo_original>
